<compile_context>
chip_gen: v6e
topology: v6e:2x2x1
jax: 0.10.0
libtpu: 0.0.40
codegen_flags: <defaults>
</compile_context>

<pallas_src>
import functools

import jax
import jax.numpy as jnp
from jax.experimental import pallas as pl
from jax.experimental.pallas import tpu as pltpu


def _round_up(x, m):
    return (x + m - 1) // m * m


@functools.lru_cache(maxsize=None)
def _pltpu_roll_is_np_roll():
    """pltpu.roll shift convention, established once per process.

    We statically expect np.roll semantics (positive shift moves elements to
    higher indices); this tiny probe asserts it on the device and raises
    loudly if the convention is neither np.roll nor its mirror (the previous
    revision silently defaulted to True on any failure).
    """
    def probe(x_ref, o_ref):
        o_ref[...] = pltpu.roll(x_ref[...], 3, axis=1)

    x = jnp.broadcast_to(jnp.arange(128, dtype=jnp.float32), (8, 128))
    y = pl.pallas_call(
        probe, out_shape=jax.ShapeDtypeStruct((8, 128), jnp.float32))(x)
    if bool(jnp.array_equal(y, jnp.roll(x, 3, axis=1))):
        return True
    if bool(jnp.array_equal(y, jnp.roll(x, -3, axis=1))):
        return False
    raise RuntimeError("Unable to determine pltpu.roll shift convention.")


def _basic_block_kernel(x_ref, w1_ref, b1_ref, w2_ref, b2_ref, o_ref,
                        *, H, W, C, Cp, B, np_roll):
    """Fused BasicBlock for B images (B*HW slab resident in VMEM).

    x_ref  : (B, C, HW)        input images, spatial on the lane axis
    w1_ref : (3, Cp, 3*Cp) bf16  conv1 im2col weights (BN1 scale folded),
                                  K ordered (kh major; kw, cin within a row)
    b1_ref : (Cp, 1)       f32   BN1 bias (padded rows zero)
    w2_ref : (3, C, 3*Cp)  bf16  conv2 im2col weights (BN2 scale folded)
    b2_ref : (C, 1)        f32   BN2 bias
    o_ref  : (B, C, HW)    f32
    """
    HW = H * W
    BHW = B * HW

    # Widen the batch onto the lane axis: (B, C, HW) -> (C, B*HW).
    x = jnp.concatenate([x_ref[b] for b in range(B)], axis=1).astype(jnp.float32)

    # In-kernel border masks: one (1, B*HW) boolean row per non-center tap.
    # Replaces the old (9*Cp, HW) f32 HBM mask operand entirely.
    lane = jax.lax.broadcasted_iota(jnp.int32, (1, BHW), 1)
    hw = lane % HW
    hh = hw // W
    ww = hw % W
    valid = {}
    for dh in (-1, 0, 1):
        for dw in (-1, 0, 1):
            if dh == 0 and dw == 0:
                continue
            conds = []
            if dh != 0:
                conds += [hh + dh >= 0, hh + dh < H]
            if dw != 0:
                conds += [ww + dw >= 0, ww + dw < W]
            m = conds[0]
            for cond in conds[1:]:
                m = m & cond
            valid[(dh, dw)] = m

    def conv3x3_bn(img, w_ref, b_ref, cout):
        """3x3 conv (BN scale folded into w) as 3 accumulated K-groups.

        Only a (3*Cp, B*HW) bf16 patch slab is materialized per group
        (perf feedback #3), not the full 9-tap im2col tensor.
        """
        acc = jnp.zeros((cout, BHW), jnp.float32)
        for kh in range(3):
            dh = kh - 1
            taps = []
            for kw in range(3):
                dw = kw - 1
                shift = dh * W + dw
                if shift == 0:                       # center tap: always valid
                    taps.append(img.astype(jnp.bfloat16))
                    continue
                amt = (-shift) % BHW if np_roll else shift % BHW
                tap = pltpu.roll(img, amt, axis=1).astype(jnp.bfloat16)
                taps.append(jnp.where(valid[(dh, dw)], tap, 0))
            slab = jnp.concatenate(taps, axis=0)     # (3*Cp, B*HW) bf16
            acc = acc + jnp.dot(w_ref[kh], slab,
                                preferred_element_type=jnp.float32)
        return acc + b_ref[...]

    # Pad channels to the 8-row f32 sublane tile (VMEM-local, no HBM pass).
    if Cp == C:
        xp = x
    else:
        xp = jnp.concatenate([x, jnp.zeros((Cp - C, BHW), x.dtype)], axis=0)

    # conv1 -> bn1 -> relu   (padded rows stay exactly zero)
    h1 = jnp.maximum(conv3x3_bn(xp, w1_ref, b1_ref, Cp), 0.0)

    # conv2 -> bn2 -> +residual -> relu
    out = jnp.maximum(conv3x3_bn(h1, w2_ref, b2_ref, C) + x, 0.0)

    # Un-widen: one lane-dense (C, HW) store per image (lane offsets are
    # multiples of HW = k*128).
    for b in range(B):
        o_ref[b] = out[:, b * HW:(b + 1) * HW].astype(o_ref.dtype)


def fold_basic_block_params(w1, g1, be1, m1, v1, w2, g2, be2, m2, v2, eps=1e-5):
    """One-time (init-time) folding of inference BatchNorm into im2col weights.

    Hoisted out of the per-call path (perf feedback #7): at inference these
    are constants.
    """
    C = w1.shape[0]
    assert w1.shape == (C, C, 3, 3) and w2.shape == (C, C, 3, 3), (
        "fused kernel assumes inplanes == planes (identity shortcut)")
    Cp = _round_up(C, 8)

    s1 = g1 / jnp.sqrt(v1 + eps)
    b1 = be1 - m1 * s1
    s2 = g2 / jnp.sqrt(v2 + eps)
    b2 = be2 - m2 * s2

    def pack(w, scale, out_pad):
        # OIHW (O, I, 3, 3) -> (3, O+pad, 3*Cp): per-kh weight row-groups with
        # K ordered (kw, cin), BN scale folded in, bf16 MXU operand.
        o = w.shape[0] + out_pad
        wm = jnp.transpose(w, (0, 2, 3, 1)) * scale[:, None, None, None]
        wm = jnp.pad(wm, ((0, out_pad), (0, 0), (0, 0), (0, Cp - C)))
        wm = jnp.transpose(wm, (1, 0, 2, 3))          # (3, O+pad, 3, Cp)
        return wm.reshape(3, o, 3 * Cp).astype(jnp.bfloat16)

    return {
        "C": C, "Cp": Cp,
        "w1": pack(w1, s1, Cp - C),                                  # (3,Cp,3Cp)
        "b1": jnp.pad(b1, (0, Cp - C)).reshape(Cp, 1).astype(jnp.float32),
        "w2": pack(w2, s2, 0),                                       # (3,C,3Cp)
        "b2": b2.reshape(C, 1).astype(jnp.float32),
    }


def _pick_images_per_step(N, HW, Cp, target_lanes=2048, act_budget=8 << 20):
    """Largest divisor of N whose lane width B*HW stays within budget.

    Widens the MXU N-dim and amortizes per-step overhead (perf feedback #1).
    """
    best = 1
    for b in range(1, N + 1):
        if N % b != 0:
            continue
        lanes = b * HW
        footprint = lanes * Cp * 4 * 6      # rough per-step activation bytes
        if lanes <= max(target_lanes, HW) and footprint <= act_budget:
            best = b
    return best


def basic_block_forward(x_nchw, folded):
    """BasicBlock forward (stride=1, identity shortcut). NCHW in / NCHW out."""
    N, C, H, W = x_nchw.shape
    assert C == folded["C"]
    Cp = folded["Cp"]
    HW = H * W
    B = _pick_images_per_step(N, HW, Cp)

    # Free reshape only -- no f32 cast, no channel-pad HBM pass (feedback #6).
    x_flat = x_nchw.reshape(N, C, HW)

    kernel = functools.partial(
        _basic_block_kernel, H=H, W=W, C=C, Cp=Cp, B=B,
        np_roll=_pltpu_roll_is_np_roll())

    w1m, b1p = folded["w1"], folded["b1"]
    w2m, b2p = folded["w2"], folded["b2"]

    flops = 2 * (2 * N * HW * (9 * C) * C)               # two 3x3 convs
    bytes_accessed = int(x_flat.size * x_flat.dtype.itemsize
                         + N * C * HW * 4
                         + (w1m.size + w2m.size) * 2
                         + (b1p.size + b2p.size) * 4)
    block_bytes = (2 * B * C * HW * 4 + (w1m.size + w2m.size) * 2
                   + (b1p.size + b2p.size) * 4)
    vmem_limit = int(min(64 << 20, max(16 << 20, 4 * block_bytes)))

    def run(single_buffer_invariants):
        def inv_spec(shape):
            idx = lambda n, _s=shape: (0,) * len(_s)
            if single_buffer_invariants:
                # Grid-invariant operands: double-buffering them wastes VMEM.
                return pl.BlockSpec(shape, idx, pipeline_mode=pl.Buffered(1))
            return pl.BlockSpec(shape, idx)

        return pl.pallas_call(
            kernel,
            out_shape=jax.ShapeDtypeStruct((N, C, HW), jnp.float32),
            grid=(N // B,),
            in_specs=[
                pl.BlockSpec((B, C, HW), lambda n: (n, 0, 0)),   # images
                inv_spec(w1m.shape),                             # w1 (im2col)
                inv_spec(b1p.shape),                             # b1
                inv_spec(w2m.shape),                             # w2 (im2col)
                inv_spec(b2p.shape),                             # b2
            ],
            out_specs=pl.BlockSpec((B, C, HW), lambda n: (n, 0, 0)),
            compiler_params=pltpu.CompilerParams(
                dimension_semantics=("parallel",),
                vmem_limit_bytes=vmem_limit),
            cost_estimate=pl.CostEstimate(
                flops=flops, transcendentals=0,
                bytes_accessed=bytes_accessed),
        )(x_flat, w1m, b1p, w2m, b2p)

    try:
        out = run(True)
    except Exception:
        # This JAX build rejects pl.Buffered(1) single-buffering; fall back to
        # default pipelining for the invariant operands (semantics identical).
        out = run(False)

    return out.reshape(N, C, H, W)


def _reference_forward(x, w1_eff, b1, w2_eff, b2):
    """Pure-JAX NCHW reference using the same bf16-operand / f32-accum math."""
    dn = ('NCHW', 'OIHW', 'NCHW')
    y = jax.lax.conv_general_dilated(
        x.astype(jnp.bfloat16), w1_eff, (1, 1), ((1, 1), (1, 1)),
        dimension_numbers=dn, preferred_element_type=jnp.float32)
    y = jnp.maximum(y + b1[None, :, None, None], 0.0)
    y = jax.lax.conv_general_dilated(
        y.astype(jnp.bfloat16), w2_eff, (1, 1), ((1, 1), (1, 1)),
        dimension_numbers=dn, preferred_element_type=jnp.float32)
    y = y + b2[None, :, None, None]
    return jnp.maximum(y + x, 0.0)


if __name__ == "__main__":
    N, C, H, W = 2, 4, 16, 16          # inplanes = planes = 4, stride = 1
    eps = 1e-5

    key = jax.random.PRNGKey(0)
    keys = jax.random.split(key, 11)

    x = jax.random.normal(keys[0], (N, C, H, W), jnp.float32)

    # conv weights (out, in, 3, 3), bias=False
    w1 = 0.1 * jax.random.normal(keys[1], (C, C, 3, 3), jnp.float32)
    w2 = 0.1 * jax.random.normal(keys[2], (C, C, 3, 3), jnp.float32)

    # BatchNorm parameters / running stats (inference semantics)
    g1 = jax.random.uniform(keys[3], (C,), jnp.float32, 0.5, 1.5)
    be1 = 0.1 * jax.random.normal(keys[4], (C,), jnp.float32)
    m1 = 0.1 * jax.random.normal(keys[5], (C,), jnp.float32)
    v1 = jax.random.uniform(keys[6], (C,), jnp.float32, 0.5, 1.5)
    g2 = jax.random.uniform(keys[7], (C,), jnp.float32, 0.5, 1.5)
    be2 = 0.1 * jax.random.normal(keys[8], (C,), jnp.float32)
    m2 = 0.1 * jax.random.normal(keys[9], (C,), jnp.float32)
    v2 = jax.random.uniform(keys[10], (C,), jnp.float32, 0.5, 1.5)

    # One-time parameter folding (hoisted out of the per-call path).
    folded = fold_basic_block_params(w1, g1, be1, m1, v1,
                                     w2, g2, be2, m2, v2, eps)

    out = basic_block_forward(x, folded)
    out = jax.block_until_ready(out)

    # Reference built with the same folded bf16 weights / f32 accumulation
    # (bf16 activation quantization at the conv inputs is a documented,
    # intentional tradeoff vs an all-f32 PyTorch block).
    s1 = g1 / jnp.sqrt(v1 + eps); b1 = be1 - m1 * s1
    s2 = g2 / jnp.sqrt(v2 + eps); b2 = be2 - m2 * s2
    w1_eff = (w1 * s1[:, None, None, None]).astype(jnp.bfloat16)
    w2_eff = (w2 * s2[:, None, None, None]).astype(jnp.bfloat16)
    ref = _reference_forward(x, w1_eff, b1, w2_eff, b2)

    assert out.shape == (N, C, H, W)
    err = float(jnp.max(jnp.abs(out - ref)))
    assert jnp.allclose(out, ref, rtol=1e-2, atol=1e-2), err

    print("KERNEL_OK")
</pallas_src>

<mosaic_0001>
module attributes {stable_mosaic.version = 11 : i64} {
  func.func @probe(%arg0: memref<8x128xf32, #tpu.memory_space<vmem>>, %arg1: memref<8x128xf32, #tpu.memory_space<vmem>>) attributes {dimension_semantics = [], scalar_prefetch = 0 : i64, scratch_operands = 0 : i64, tpu.core_type = #tpu.core_type<tc>} {
    %c0 = arith.constant 0 : index
    %c0_0 = arith.constant 0 : index
    %0 = vector.load %arg0[%c0, %c0_0] : memref<8x128xf32, #tpu.memory_space<vmem>>, vector<8x128xf32>
    %c3_i32 = arith.constant 3 : i32
    %1 = tpu.dynamic_rotate %0 by %c3_i32 dim 1 : vector<8x128xf32>, i32 -> vector<8x128xf32>
    %c0_1 = arith.constant 0 : index
    %c0_2 = arith.constant 0 : index
    %2 = vector.load %arg1[%c0_1, %c0_2] : memref<8x128xf32, #tpu.memory_space<vmem>>, vector<8x128xf32>
    tpu.vector_store %arg1[%c0_1, %c0_2], %1 {strides = array<i32>} : memref<8x128xf32, #tpu.memory_space<vmem>>, vector<8x128xf32>,
    return
  }
}

</mosaic_0001>

<llo_original>
// kernel: tpu_custom_call.1
$region0: #{tpu_custom_call.1}
  #allocation0 [shape = 'u32[]', space=smem, size = 0x4, offset = 0x4, fixed_abs, tag = 'smem constant byte address 0x4 - core index']
  #allocation1 [shape = 'u32[144,128]{1,0:T(1,128)}', space=vmem, size = 0x12000, scoped, tag = 'internal scratch']
  %s0 = inlined_call_operand.hbm [shape: f32[8,128], index: 0, kind: input, shape index: {}]
  %s1 = inlined_call_operand.hbm [shape: f32[8,128], index: 1, kind: output, shape index: {}]
  %s2 = sld [smem:[#allocation0]]
  $region18: #{tpu_custom_call.1} parent=0
    _
  %s4 = ssub.s32 1, %s2
  %s5 = scalar_select 0, %s4, %s2
  $region1: #{tpu_custom_call.1} parent=0
    #allocation2 [shape = 'u8[4096]{0}', space=vmem, size = 0x1000, scoped, tag = 'input window, operand 0, single buffered']
    #allocation3 [shape = 's32[1]{0}', space=sflag, size = 0x4, scoped, tag = 'scoped memory for tpu_custom_call.1']
    #allocation4 [shape = 's32[1]{0}', space=sflag, size = 0x4, scoped, tag = 'scoped memory for tpu_custom_call.1']
    #allocation5 [shape = 'u8[4096]{0}', space=vmem, size = 0x1000, scoped, tag = 'output window, operand 0, single buffered']
    %6 = vsyncpa [#allocation3], 0
    %7 = vsyncpa [#allocation4], 0
    // Predicated region
    $region2: #{tpu_custom_call.1} parent=1 // pred_check
      _
    $region3: #{tpu_custom_call.1} parent=1 // pred_check_branch
      %9 = sbr.rel (0) target = $region5
    $region4: #{tpu_custom_call.1} parent=1 // pred_region
      %s11 = ssub.s32 128, 128
      %12 = vsyncadd [#allocation3], %s11
      %s14 = sshll.u32 [#allocation2], 4
      %s15 = int_to_ptr.vmem [resolvable:$true] %s14
      %17 = dma.hbm_to_vmem [thread:$0]  %s0, 128, %s15, [#allocation3]
    $region5: #{tpu_custom_call.1} parent=1 // pred_fallthru
      _
    // Predicated region
    $region6: #{tpu_custom_call.1} parent=1 // pred_check
      _
    $region7: #{tpu_custom_call.1} parent=1 // pred_check_branch
      %19 = sbr.rel (0) target = $region9
    $region8: #{tpu_custom_call.1} parent=1 // pred_region
      %20 = dma.done [#allocation3], 128
    $region9: #{tpu_custom_call.1} parent=1 // pred_fallthru
      _
    %v21 = vld [vmem:[#allocation2] sm:$0xff]
    %22 = vrot.lane.b32.xlu0 %v21, 3
    %v23 = vpop.permute.xlu0 %22
    %24 = vst [vmem:[#allocation5] sm:$0xff] %v23
    // Predicated region
    $region10: #{tpu_custom_call.1} parent=1 // pred_check
      _
    $region11: #{tpu_custom_call.1} parent=1 // pred_check_branch
      %26 = sbr.rel (0) target = $region13
    $region12: #{tpu_custom_call.1} parent=1 // pred_region
      %s28 = ssub.s32 128, 128
      %29 = vsyncadd [#allocation4], %s28
      %s31 = sshll.u32 [#allocation5], 4
      %s32 = int_to_ptr.vmem [resolvable:$true] %s31
      %34 = dma.vmem_to_hbm [thread:$0]  %s32, 128, %s1, [#allocation4]
    $region13: #{tpu_custom_call.1} parent=1 // pred_fallthru
      _
    // Predicated region
    $region14: #{tpu_custom_call.1} parent=1 // pred_check
      _
    $region15: #{tpu_custom_call.1} parent=1 // pred_check_branch
      %36 = sbr.rel (0) target = $region17
    $region16: #{tpu_custom_call.1} parent=1 // pred_region
      %37 = dma.done [#allocation4], 128
    $region17: #{tpu_custom_call.1} parent=1 // pred_fallthru
      _
    %38 = vsyncpa [#allocation3], 1
    %39 = vsyncpa [#allocation4], 1

</llo_original>
